<compile_context>
chip_gen: v5e
topology: v5e:2x2
jax: 0.10.0
libtpu: 0.0.40
codegen_flags: <defaults>
</compile_context>

<pallas_src>
import functools
import math

import jax
import jax.numpy as jnp
from jax import lax
from jax.experimental import pallas as pl
from jax.experimental.pallas import tpu as pltpu

AMP = 1.0 / math.sqrt(2.0 * math.pi)
LOG_SQRT_2PI = 0.5 * math.log(2.0 * math.pi)   # == log(1 / AMP)
SQRT2 = math.sqrt(2.0)
EPS = 1e-9

_LANES = 128
# 5 inputs x 2 (double buffer) x 2048*128*4 B = 10 MiB.  Raise
# vmem_limit_bytes before growing beyond 2048 rows on v5e; never exceed
# ~4096 rows on v7x (64 MiB physical VMEM per TC).
_MAX_TILE_ROWS = 2048


def _rle_loss_kernel(nf_ref, pred_ref, sigma_ref, gt_ref, w_ref,
                     loss_acc_ref, w_acc_ref, *,
                     steps, tile_rows, total_elems, needs_mask):
    i = pl.program_id(1)            # "arbitrary" (innermost) reduction axis

    @pl.when(i == 0)
    def _init():
        loss_acc_ref[...] = jnp.zeros_like(loss_acc_ref)
        w_acc_ref[...] = jnp.zeros_like(w_acc_ref)

    nf = nf_ref[...].astype(jnp.float32)
    pred = pred_ref[...].astype(jnp.float32)
    sigma = sigma_ref[...].astype(jnp.float32)
    gt = gt_ref[...].astype(jnp.float32)
    w = w_ref[...].astype(jnp.float32)

    diff = jnp.abs(gt - pred)

    if needs_mask:
        # Ragged tail and/or padded rows: mask BEFORE log / divide so garbage
        # in the (unspecified) padding can never produce NaN/Inf (NaN*0=NaN).
        t = pl.program_id(0) * steps + i                     # global tile idx
        row = lax.broadcasted_iota(jnp.int32, (tile_rows, _LANES), 0)
        lane = lax.broadcasted_iota(jnp.int32, (tile_rows, _LANES), 1)
        gidx = (t * tile_rows + row) * _LANES + lane
        valid = gidx < total_elems
        sigma = jnp.where(valid, sigma, 1.0)     # keeps log() finite
        diff = jnp.where(valid, diff, 0.0)
        nf = jnp.where(valid, nf, 0.0)
        w = jnp.where(valid, w, 0.0)

    # logQ = log(sigma/amp) + |gt-pred| / (sqrt(2)*sigma + 1e-9)
    #      = log(sigma) + 0.5*log(2*pi) + |gt-pred| / (sqrt(2)*sigma + 1e-9)
    # NOTE: exact divide kept on purpose (HBM-bound kernel; approx reciprocal
    # would cost numerical parity for zero wall-clock gain).
    log_q = jnp.log(sigma) + LOG_SQRT_2PI + diff / (SQRT2 * sigma + EPS)
    loss = (nf + log_q) * w                      # == nf*w + logQ*w

    # Per-vreg accumulation (VPU adds only; no per-step XLU reduce).  The
    # (tile_rows,128) -> (tile_rows//acc_rows, acc_rows, 128) reshape is the
    # natural vreg decomposition, so it is layout-free.
    acc_rows = loss_acc_ref.shape[0]
    loss_acc_ref[...] += loss.reshape(-1, acc_rows, _LANES).sum(axis=0)
    w_acc_ref[...] += w.reshape(-1, acc_rows, _LANES).sum(axis=0)


def rle_loss_3d(nf_loss, pred_jts, sigma, target_uvd, target_uvd_weight,
                size_average=True, *, max_tile_rows=_MAX_TILE_ROWS):
    """Functional equivalent of RLELoss3D.forward.

    nf_loss, pred_jts, sigma: shape (B, K, 3).
    target_uvd, target_uvd_weight: any shape reshapeable to pred_jts.shape.
    """
    assert max_tile_rows % 8 == 0
    batch = pred_jts.shape[0]
    total_elems = math.prod(pred_jts.shape)

    # ---- lane-dense (rows, 128) views: reshape only; pad only when forced --
    rows = -(-total_elems // _LANES)                         # ceil div
    # Tiling requires the sublane dim to be a multiple of 8 unless the block
    # spans the full array; only pad rows when we *must* tile.
    if rows % 8 != 0 and rows > max_tile_rows:
        rows = ((rows + 7) // 8) * 8
    padded_elems = rows * _LANES

    def pack(x):
        x = jnp.asarray(x)
        if not jnp.issubdtype(x.dtype, jnp.floating):
            x = x.astype(jnp.float32)
        x = x.reshape(-1)
        if padded_elems != total_elems:
            # Rare fallback (total not a multiple of 128, or forced row pad).
            # Pad value is irrelevant: the kernel masks the tail before use.
            x = jnp.pad(x, (0, padded_elems - total_elems))
        return x.reshape(rows, _LANES)           # free reshape when no pad

    inputs = [pack(nf_loss), pack(pred_jts), pack(sigma),
              pack(target_uvd), pack(target_uvd_weight)]

    # ---- grid: (core, step) -------------------------------------------------
    if rows % 8 == 0:
        tile_rows = min(max_tile_rows, rows)     # both multiples of 8
    else:
        tile_rows = rows                         # single full-extent block
    num_tiles = -(-rows // tile_rows)
    # Use both TensorCores on v7x whenever the tile count splits evenly;
    # harmless on single-core v5e/v6e (the parallel axis just serializes).
    nc = 2 if (num_tiles >= 2 and num_tiles % 2 == 0) else 1
    steps = num_tiles // nc

    needs_mask = (nc * steps * tile_rows * _LANES) > total_elems
    acc_rows = 8 if tile_rows % 8 == 0 else 1    # one vreg (or one sublane row)

    in_spec = pl.BlockSpec((tile_rows, _LANES), lambda c, i: (c * steps + i, 0))
    # Resident per-core accumulator output block (constant along the
    # "arbitrary" axis); lane-dense (128) so stores are unmasked vst.
    out_spec = pl.BlockSpec((acc_rows, _LANES), lambda c, i: (c, 0))
    out_shape = jax.ShapeDtypeStruct((nc * acc_rows, _LANES), jnp.float32)

    kernel = functools.partial(
        _rle_loss_kernel, steps=steps, tile_rows=tile_rows,
        total_elems=total_elems, needs_mask=needs_mask)

    bytes_accessed = (sum(total_elems * x.dtype.itemsize for x in inputs)
                      + 2 * nc * acc_rows * _LANES * 4)

    loss_parts, w_parts = pl.pallas_call(
        kernel,
        out_shape=(out_shape, out_shape),
        grid_spec=pltpu.PrefetchScalarGridSpec(
            num_scalar_prefetch=0,
            grid=(nc, steps),
            in_specs=[in_spec] * 5,
            out_specs=[out_spec, out_spec]),
        compiler_params=pltpu.CompilerParams(
            dimension_semantics=("parallel", "arbitrary")),
        cost_estimate=pl.CostEstimate(
            flops=8 * total_elems,
            transcendentals=2 * total_elems,     # log + divide(reciprocal)
            bytes_accessed=bytes_accessed),
    )(*inputs)

    # Trivial wrapper epilogue: combine per-core partial sums and apply the
    # size_average rule (fuses into a few scalar XLA ops).
    loss_sum = jnp.sum(loss_parts)
    if size_average:
        w_sum = jnp.sum(w_parts)
        return jnp.where(w_sum > 0, loss_sum / jnp.float32(batch), loss_sum)
    return loss_sum


def _reference(nf_loss, pred_jts, sigma, gt_uvd, gt_w, size_average=True):
    """Pure-JAX reference mirroring the PyTorch code exactly."""
    gt_uvd = gt_uvd.reshape(pred_jts.shape)
    gt_w = gt_w.reshape(pred_jts.shape)
    nf = nf_loss * gt_w
    log_q = (jnp.log(sigma / AMP)
             + jnp.abs(gt_uvd - pred_jts) / (SQRT2 * sigma + EPS)) * gt_w
    loss = nf + log_q
    if size_average:
        return jnp.where(gt_w.sum() > 0,
                         loss.sum() / pred_jts.shape[0],
                         loss.sum())
    return loss.sum()


if __name__ == "__main__":
    B, K, D = 16, 24, 3  # batch, joints, uvd coords  (16*24*3 = 1152 = 9*128)

    key = jax.random.PRNGKey(0)
    k1, k2, k3, k4, k5 = jax.random.split(key, 5)

    nf_loss = jax.random.normal(k1, (B, K, D), dtype=jnp.float32)
    pred_jts = jax.random.normal(k2, (B, K, D), dtype=jnp.float32)
    sigma = jax.random.uniform(k3, (B, K, D), dtype=jnp.float32,
                               minval=0.1, maxval=1.0)
    target_uvd = jax.random.normal(k4, (B, K * D), dtype=jnp.float32)
    target_uvd_weight = (jax.random.uniform(k5, (B, K * D),
                                            dtype=jnp.float32) > 0.2
                         ).astype(jnp.float32)

    ref = _reference(nf_loss, pred_jts, sigma, target_uvd, target_uvd_weight)

    # Main path: total % 128 == 0 -> no pads, single full-extent block.
    out = jax.block_until_ready(
        rle_loss_3d(nf_loss, pred_jts, sigma, target_uvd, target_uvd_weight))
    assert jnp.allclose(out, ref, rtol=1e-5, atol=1e-5), (out, ref)

    # size_average=False path.
    out2 = jax.block_until_ready(
        rle_loss_3d(nf_loss, pred_jts, sigma, target_uvd, target_uvd_weight,
                    size_average=False))
    ref2 = _reference(nf_loss, pred_jts, sigma, target_uvd, target_uvd_weight,
                      size_average=False)
    assert jnp.allclose(out2, ref2, rtol=1e-5, atol=1e-5), (out2, ref2)

    # Multi-tile / two-core grid / pad-fallback path (forced tiny tile).
    out3 = jax.block_until_ready(
        rle_loss_3d(nf_loss, pred_jts, sigma, target_uvd, target_uvd_weight,
                    max_tile_rows=8))
    assert jnp.allclose(out3, ref, rtol=1e-5, atol=1e-5), (out3, ref)

    # Ragged tail (total not a multiple of 128) -> in-kernel masking path.
    B2, K2, D2 = 10, 20, 3
    j1, j2, j3, j4, j5 = jax.random.split(jax.random.PRNGKey(1), 5)
    nf2 = jax.random.normal(j1, (B2, K2, D2), dtype=jnp.float32)
    pj2 = jax.random.normal(j2, (B2, K2, D2), dtype=jnp.float32)
    sg2 = jax.random.uniform(j3, (B2, K2, D2), dtype=jnp.float32,
                             minval=0.1, maxval=1.0)
    gt2 = jax.random.normal(j4, (B2, K2 * D2), dtype=jnp.float32)
    w2 = (jax.random.uniform(j5, (B2, K2 * D2), dtype=jnp.float32) > 0.2
          ).astype(jnp.float32)
    out4 = jax.block_until_ready(rle_loss_3d(nf2, pj2, sg2, gt2, w2))
    ref4 = _reference(nf2, pj2, sg2, gt2, w2)
    assert jnp.allclose(out4, ref4, rtol=1e-5, atol=1e-5), (out4, ref4)

    print("KERNEL_OK")
</pallas_src>

<mosaic_0001>
module attributes {stable_mosaic.version = 11 : i64} {
  func.func @_rle_loss_kernel(%arg0: i32, %arg1: i32, %arg2: memref<9x128xf32, #tpu.memory_space<vmem>>, %arg3: memref<9x128xf32, #tpu.memory_space<vmem>>, %arg4: memref<9x128xf32, #tpu.memory_space<vmem>>, %arg5: memref<9x128xf32, #tpu.memory_space<vmem>>, %arg6: memref<9x128xf32, #tpu.memory_space<vmem>>, %arg7: memref<1x128xf32, #tpu.memory_space<vmem>>, %arg8: memref<1x128xf32, #tpu.memory_space<vmem>>) attributes {dimension_semantics = [#tpu.dimension_semantics<parallel>, #tpu.dimension_semantics<arbitrary>], iteration_bounds = array<i64: 1, 1>, scalar_prefetch = 0 : i64, scratch_operands = 0 : i64, tpu.core_type = #tpu.core_type<tc>, window_params = [{transform_indices = @transform_0, window_bounds = array<i64: 9, 128>}, {transform_indices = @transform_1, window_bounds = array<i64: 9, 128>}, {transform_indices = @transform_2, window_bounds = array<i64: 9, 128>}, {transform_indices = @transform_3, window_bounds = array<i64: 9, 128>}, {transform_indices = @transform_4, window_bounds = array<i64: 9, 128>}, {transform_indices = @transform_5, window_bounds = array<i64: 1, 128>}, {transform_indices = @transform_6, window_bounds = array<i64: 1, 128>}]} {
    %c0_i32 = arith.constant 0 : i32
    %0 = arith.cmpi eq, %arg1, %c0_i32 : i32
    %1 = arith.extui %0 : i1 to i32
    %c0_i32_0 = arith.constant 0 : i32
    %2 = arith.cmpi ne, %1, %c0_i32_0 : i32
    scf.if %2 {
      %cst_22 = arith.constant 0.000000e+00 : f32
      %31 = vector.broadcast %cst_22 : f32 to vector<1x128xf32>
      %c0_23 = arith.constant 0 : index
      %c0_24 = arith.constant 0 : index
      %32 = vector.load %arg7[%c0_23, %c0_24] : memref<1x128xf32, #tpu.memory_space<vmem>>, vector<1x128xf32>
      tpu.vector_store %arg7[%c0_23, %c0_24], %31 {strides = array<i32>} : memref<1x128xf32, #tpu.memory_space<vmem>>, vector<1x128xf32>,
      %cst_25 = arith.constant 0.000000e+00 : f32
      %33 = vector.broadcast %cst_25 : f32 to vector<1x128xf32>
      %c0_26 = arith.constant 0 : index
      %c0_27 = arith.constant 0 : index
      %34 = vector.load %arg8[%c0_26, %c0_27] : memref<1x128xf32, #tpu.memory_space<vmem>>, vector<1x128xf32>
      tpu.vector_store %arg8[%c0_26, %c0_27], %33 {strides = array<i32>} : memref<1x128xf32, #tpu.memory_space<vmem>>, vector<1x128xf32>,
    } else {
    }
    %c0 = arith.constant 0 : index
    %c0_1 = arith.constant 0 : index
    %3 = vector.load %arg2[%c0, %c0_1] : memref<9x128xf32, #tpu.memory_space<vmem>>, vector<9x128xf32>
    %c0_2 = arith.constant 0 : index
    %c0_3 = arith.constant 0 : index
    %4 = vector.load %arg3[%c0_2, %c0_3] : memref<9x128xf32, #tpu.memory_space<vmem>>, vector<9x128xf32>
    %c0_4 = arith.constant 0 : index
    %c0_5 = arith.constant 0 : index
    %5 = vector.load %arg4[%c0_4, %c0_5] : memref<9x128xf32, #tpu.memory_space<vmem>>, vector<9x128xf32>
    %c0_6 = arith.constant 0 : index
    %c0_7 = arith.constant 0 : index
    %6 = vector.load %arg5[%c0_6, %c0_7] : memref<9x128xf32, #tpu.memory_space<vmem>>, vector<9x128xf32>
    %c0_8 = arith.constant 0 : index
    %c0_9 = arith.constant 0 : index
    %7 = vector.load %arg6[%c0_8, %c0_9] : memref<9x128xf32, #tpu.memory_space<vmem>>, vector<9x128xf32>
    %8 = arith.subf %6, %4 : vector<9x128xf32>
    %9 = math.absf %8 : vector<9x128xf32>
    %10 = math.log %5 : vector<9x128xf32>
    %cst = arith.constant 0.918938517 : f32
    %11 = vector.broadcast %cst : f32 to vector<9x128xf32>
    %12 = arith.addf %10, %11 : vector<9x128xf32>
    %cst_10 = arith.constant 1.41421354 : f32
    %13 = vector.broadcast %cst_10 : f32 to vector<9x128xf32>
    %14 = arith.mulf %13, %5 : vector<9x128xf32>
    %cst_11 = arith.constant 9.99999971E-10 : f32
    %15 = vector.broadcast %cst_11 : f32 to vector<9x128xf32>
    %16 = arith.addf %14, %15 : vector<9x128xf32>
    %17 = arith.divf %9, %16 : vector<9x128xf32>
    %18 = arith.addf %12, %17 : vector<9x128xf32>
    %19 = arith.addf %3, %18 : vector<9x128xf32>
    %20 = arith.mulf %19, %7 : vector<9x128xf32>
    %c0_12 = arith.constant 0 : index
    %c0_13 = arith.constant 0 : index
    %21 = vector.load %arg7[%c0_12, %c0_13] : memref<1x128xf32, #tpu.memory_space<vmem>>, vector<1x128xf32>
    %22 = vector.shape_cast %20 : vector<9x128xf32> to vector<9x1x128xf32>
    %cst_14 = arith.constant dense<0.000000e+00> : vector<1x128xf32>
    %23 = vector.multi_reduction <add>, %22, %cst_14 [0] : vector<9x1x128xf32> to vector<1x128xf32>
    %24 = arith.addf %21, %23 : vector<1x128xf32>
    %c0_15 = arith.constant 0 : index
    %c0_16 = arith.constant 0 : index
    %25 = vector.load %arg7[%c0_15, %c0_16] : memref<1x128xf32, #tpu.memory_space<vmem>>, vector<1x128xf32>
    tpu.vector_store %arg7[%c0_15, %c0_16], %24 {strides = array<i32>} : memref<1x128xf32, #tpu.memory_space<vmem>>, vector<1x128xf32>,
    %c0_17 = arith.constant 0 : index
    %c0_18 = arith.constant 0 : index
    %26 = vector.load %arg8[%c0_17, %c0_18] : memref<1x128xf32, #tpu.memory_space<vmem>>, vector<1x128xf32>
    %27 = vector.shape_cast %7 : vector<9x128xf32> to vector<9x1x128xf32>
    %cst_19 = arith.constant dense<0.000000e+00> : vector<1x128xf32>
    %28 = vector.multi_reduction <add>, %27, %cst_19 [0] : vector<9x1x128xf32> to vector<1x128xf32>
    %29 = arith.addf %26, %28 : vector<1x128xf32>
    %c0_20 = arith.constant 0 : index
    %c0_21 = arith.constant 0 : index
    %30 = vector.load %arg8[%c0_20, %c0_21] : memref<1x128xf32, #tpu.memory_space<vmem>>, vector<1x128xf32>
    tpu.vector_store %arg8[%c0_20, %c0_21], %29 {strides = array<i32>} : memref<1x128xf32, #tpu.memory_space<vmem>>, vector<1x128xf32>,
    return
  }
  func.func @transform_0(%arg0: i32, %arg1: i32) -> (i32, i32) {
    %c1_i32 = arith.constant 1 : i32
    %0 = arith.muli %arg0, %c1_i32 : i32
    %1 = arith.addi %0, %arg1 : i32
    %c0_i32 = arith.constant 0 : i32
    %c0_i32_0 = arith.constant 0 : i32
    return %1, %c0_i32 : i32, i32
  }
  func.func @transform_1(%arg0: i32, %arg1: i32) -> (i32, i32) {
    %c1_i32 = arith.constant 1 : i32
    %0 = arith.muli %arg0, %c1_i32 : i32
    %1 = arith.addi %0, %arg1 : i32
    %c0_i32 = arith.constant 0 : i32
    %c0_i32_0 = arith.constant 0 : i32
    return %1, %c0_i32 : i32, i32
  }
  func.func @transform_2(%arg0: i32, %arg1: i32) -> (i32, i32) {
    %c1_i32 = arith.constant 1 : i32
    %0 = arith.muli %arg0, %c1_i32 : i32
    %1 = arith.addi %0, %arg1 : i32
    %c0_i32 = arith.constant 0 : i32
    %c0_i32_0 = arith.constant 0 : i32
    return %1, %c0_i32 : i32, i32
  }
  func.func @transform_3(%arg0: i32, %arg1: i32) -> (i32, i32) {
    %c1_i32 = arith.constant 1 : i32
    %0 = arith.muli %arg0, %c1_i32 : i32
    %1 = arith.addi %0, %arg1 : i32
    %c0_i32 = arith.constant 0 : i32
    %c0_i32_0 = arith.constant 0 : i32
    return %1, %c0_i32 : i32, i32
  }
  func.func @transform_4(%arg0: i32, %arg1: i32) -> (i32, i32) {
    %c1_i32 = arith.constant 1 : i32
    %0 = arith.muli %arg0, %c1_i32 : i32
    %1 = arith.addi %0, %arg1 : i32
    %c0_i32 = arith.constant 0 : i32
    %c0_i32_0 = arith.constant 0 : i32
    return %1, %c0_i32 : i32, i32
  }
  func.func @transform_5(%arg0: i32, %arg1: i32) -> (i32, i32) {
    %c0_i32 = arith.constant 0 : i32
    %c0_i32_0 = arith.constant 0 : i32
    return %arg0, %c0_i32 : i32, i32
  }
  func.func @transform_6(%arg0: i32, %arg1: i32) -> (i32, i32) {
    %c0_i32 = arith.constant 0 : i32
    %c0_i32_0 = arith.constant 0 : i32
    return %arg0, %c0_i32 : i32, i32
  }
}

</mosaic_0001>

<llo_original>
// kernel: tpu_custom_call.1
$region0: #{tpu_custom_call.1}
  #allocation0 [shape = 'u32[]', space=smem, size = 0x4, offset = 0x4, fixed_abs, tag = 'smem constant byte address 0x4 - core index']
  #allocation1 [shape = 'u32[72,128]{1,0:T(1,128)}', space=vmem, size = 0x9000, scoped, tag = 'internal scratch']
  %s0 = inlined_call_operand.hbm [shape: f32[9,128], index: 0, kind: input, shape index: {}]
  %s1 = inlined_call_operand.hbm [shape: f32[9,128], index: 1, kind: input, shape index: {}]
  %s2 = inlined_call_operand.hbm [shape: f32[9,128], index: 2, kind: input, shape index: {}]
  %s3 = inlined_call_operand.hbm [shape: f32[9,128], index: 3, kind: input, shape index: {}]
  %s4 = inlined_call_operand.hbm [shape: f32[9,128], index: 4, kind: input, shape index: {}]
  %s5 = inlined_call_operand.hbm [shape: f32[1,128], index: 5, kind: output, shape index: {0}]
  %s6 = inlined_call_operand.hbm [shape: f32[1,128], index: 6, kind: output, shape index: {1}]
  %7 = xla_tuple %s5, %s6
  %s8 = sld [smem:[#allocation0]]
  $region62: #{tpu_custom_call.1} parent=0
    _
  %s10 = ssub.s32 1, %s8
  %s11 = scalar_select 0, %s10, %s8
  $region1: #{tpu_custom_call.1} parent=0
    #allocation2 [shape = 'u8[8192]{0}', space=vmem, size = 0x2000, scoped, tag = 'input window, operand 0, single buffered']
    #allocation3 [shape = 's32[1]{0}', space=sflag, size = 0x4, scoped, tag = 'scoped memory for tpu_custom_call.1']
    #allocation4 [shape = 's32[1]{0}', space=sflag, size = 0x4, scoped, tag = 'scoped memory for tpu_custom_call.1']
    #allocation5 [shape = 'u8[8192]{0}', space=vmem, size = 0x2000, scoped, tag = 'input window, operand 1, single buffered']
    #allocation6 [shape = 's32[1]{0}', space=sflag, size = 0x4, scoped, tag = 'scoped memory for tpu_custom_call.1']
    #allocation7 [shape = 'u8[8192]{0}', space=vmem, size = 0x2000, scoped, tag = 'input window, operand 2, single buffered']
    #allocation8 [shape = 'u8[8192]{0}', space=vmem, size = 0x2000, scoped, tag = 'input window, operand 3, single buffered']
    #allocation9 [shape = 's32[1]{0}', space=sflag, size = 0x4, scoped, tag = 'scoped memory for tpu_custom_call.1']
    #allocation10 [shape = 'u8[8192]{0}', space=vmem, size = 0x2000, scoped, tag = 'input window, operand 4, single buffered']
    #allocation11 [shape = 'u8[512]{0}', space=vmem, size = 0x400, scoped, tag = 'output window, operand 0, single buffered']
    #allocation12 [shape = 'u8[512]{0}', space=vmem, size = 0x400, scoped, tag = 'output window, operand 1, single buffered']
    #allocation13 [shape = 's32[1]{0}', space=sflag, size = 0x4, scoped, tag = 'scoped memory for tpu_custom_call.1']
    %12 = vsyncpa [#allocation3], 0
    %13 = vsyncpa [#allocation6], 0
    %14 = vsyncpa [#allocation9], 0
    %15 = vsyncpa [#allocation4], 0
    %16 = vsyncpa [#allocation13], 0
    // Predicated region
    $region2: #{tpu_custom_call.1} parent=1 // pred_check
      _
    $region3: #{tpu_custom_call.1} parent=1 // pred_check_branch
      %18 = sbr.rel (0) target = $region5
    $region4: #{tpu_custom_call.1} parent=1 // pred_region
      %s19 = sadd.s32 0, 0
      %s20 = smul.u32 2, %s19
      %22 = vsyncadd [#allocation3], 0
      %s23 = smul.addr %s20, 8
      %s24 = scalar_lea.hbm %s0, %s23
      %s25 = sshll.u32 %s24, 4
      %s26 = int_to_ptr.hbm [resolvable:$true] %s25
      %s27 = sshll.u32 [#allocation2], 4
      %s28 = int_to_ptr.vmem [resolvable:$true] %s27
      %33 = dma.hbm_to_vmem [thread:$0]  %s26, 256, %s28, [#allocation3], 128, 128, 8
    $region5: #{tpu_custom_call.1} parent=1 // pred_fallthru
      _
    // Predicated region
    $region6: #{tpu_custom_call.1} parent=1 // pred_check
      _
    $region7: #{tpu_custom_call.1} parent=1 // pred_check_branch
      %35 = sbr.rel (0) target = $region9
    $region8: #{tpu_custom_call.1} parent=1 // pred_region
      %s36 = sadd.s32 0, 0
      %s37 = smul.u32 2, %s36
      %39 = vsyncadd [#allocation6], 0
      %s40 = smul.addr %s37, 8
      %s41 = scalar_lea.hbm %s1, %s40
      %s42 = sshll.u32 %s41, 4
      %s43 = int_to_ptr.hbm [resolvable:$true] %s42
      %s44 = sshll.u32 [#allocation5], 4
      %s45 = int_to_ptr.vmem [resolvable:$true] %s44
      %50 = dma.hbm_to_vmem [thread:$0]  %s43, 256, %s45, [#allocation6], 128, 128, 8
    $region9: #{tpu_custom_call.1} parent=1 // pred_fallthru
      _
    // Predicated region
    $region10: #{tpu_custom_call.1} parent=1 // pred_check
      _
    $region11: #{tpu_custom_call.1} parent=1 // pred_check_branch
      %52 = sbr.rel (0) target = $region13
    $region12: #{tpu_custom_call.1} parent=1 // pred_region
      %s53 = sadd.s32 0, 0
      %s54 = smul.u32 2, %s53
      %56 = vsyncadd [#allocation6], 0
      %s57 = smul.addr %s54, 8
      %s58 = scalar_lea.hbm %s2, %s57
      %s59 = sshll.u32 %s58, 4
      %s60 = int_to_ptr.hbm [resolvable:$true] %s59
      %s61 = sshll.u32 [#allocation7], 4
      %s62 = int_to_ptr.vmem [resolvable:$true] %s61
      %67 = dma.hbm_to_vmem [thread:$0]  %s60, 256, %s62, [#allocation6], 128, 128, 8
    $region13: #{tpu_custom_call.1} parent=1 // pred_fallthru
      _
    // Predicated region
    $region14: #{tpu_custom_call.1} parent=1 // pred_check
      _
    $region15: #{tpu_custom_call.1} parent=1 // pred_check_branch
      %69 = sbr.rel (0) target = $region17
    $region16: #{tpu_custom_call.1} parent=1 // pred_region
      %s70 = sadd.s32 0, 0
      %s71 = smul.u32 2, %s70
      %73 = vsyncadd [#allocation9], 0
      %s74 = smul.addr %s71, 8
      %s75 = scalar_lea.hbm %s3, %s74
      %s76 = sshll.u32 %s75, 4
      %s77 = int_to_ptr.hbm [resolvable:$true] %s76
      %s78 = sshll.u32 [#allocation8], 4
      %s79 = int_to_ptr.vmem [resolvable:$true] %s78
      %84 = dma.hbm_to_vmem [thread:$0]  %s77, 256, %s79, [#allocation9], 128, 128, 8
    $region17: #{tpu_custom_call.1} parent=1 // pred_fallthru
      _
    // Predicated region
    $region18: #{tpu_custom_call.1} parent=1 // pred_check
      _
    $region19: #{tpu_custom_call.1} parent=1 // pred_check_branch
      %86 = sbr.rel (0) target = $region21
    $region20: #{tpu_custom_call.1} parent=1 // pred_region
      %s87 = sadd.s32 0, 0
      %s88 = smul.u32 2, %s87
      %90 = vsyncadd [#allocation9], 0
      %s91 = smul.addr %s88, 8
      %s92 = scalar_lea.hbm %s4, %s91
      %s93 = sshll.u32 %s92, 4
      %s94 = int_to_ptr.hbm [resolvable:$true] %s93
      %s95 = sshll.u32 [#allocation10], 4
      %s96 = int_to_ptr.vmem [resolvable:$true] %s95
      %101 = dma.hbm_to_vmem [thread:$0]  %s94, 256, %s96, [#allocation9], 128, 128, 8
    $region21: #{tpu_custom_call.1} parent=1 // pred_fallthru
      _
    // Predicated region
    $region22: #{tpu_custom_call.1} parent=1 // pred_check
      _
    $region23: #{tpu_custom_call.1} parent=1 // pred_check_branch
      %103 = sbr.rel (0) target = $region25
    $region24: #{tpu_custom_call.1} parent=1 // pred_region
      %105 = dma.done [#allocation3], 256
    $region25: #{tpu_custom_call.1} parent=1 // pred_fallthru
      _
    // Predicated region
    $region26: #{tpu_custom_call.1} parent=1 // pred_check
      _
    $region27: #{tpu_custom_call.1} parent=1 // pred_check_branch
      %107 = sbr.rel (0) target = $region29
    $region28: #{tpu_custom_call.1} parent=1 // pred_region
      %109 = dma.done [#allocation6], 256
    $region29: #{tpu_custom_call.1} parent=1 // pred_fallthru
      _
    // Predicated region
    $region30: #{tpu_custom_call.1} parent=1 // pred_check
      _
    $region31: #{tpu_custom_call.1} parent=1 // pred_check_branch
      %111 = sbr.rel (0) target = $region33
    $region32: #{tpu_custom_call.1} parent=1 // pred_region
      %113 = dma.done [#allocation6], 256
    $region33: #{tpu_custom_call.1} parent=1 // pred_fallthru
      _
    // Predicated region
    $region34: #{tpu_custom_call.1} parent=1 // pred_check
      _
    $region35: #{tpu_custom_call.1} parent=1 // pred_check_branch
      %115 = sbr.rel (0) target = $region37
    $region36: #{tpu_custom_call.1} parent=1 // pred_region
      %117 = dma.done [#allocation9], 256
    $region37: #{tpu_custom_call.1} parent=1 // pred_fallthru
      _
    // Predicated region
    $region38: #{tpu_custom_call.1} parent=1 // pred_check
      _
    $region39: #{tpu_custom_call.1} parent=1 // pred_check_branch
      %119 = sbr.rel (0) target = $region41
    $region40: #{tpu_custom_call.1} parent=1 // pred_region
      %121 = dma.done [#allocation9], 256
    $region41: #{tpu_custom_call.1} parent=1 // pred_fallthru
      _
    %s122 = sadd.s32 0, 0
    %s123 = smul.u32 2, %s122
    %s124 = sadd.s32 0, 0
    %s125 = smul.u32 2, %s124
    %s126 = sadd.s32 0, 0
    %s127 = smul.u32 2, %s126
    %s128 = sadd.s32 0, 0
    %s129 = smul.u32 2, %s128
    %s130 = sadd.s32 0, 0
    %s131 = smul.u32 2, %s130
    %p132 = scmp.eq.s32.totalorder 0, 0
    // Predicated region
    $region42: #{tpu_custom_call.1} parent=1 // pred_check
      %p133 = pneg %p132
    $region43: #{tpu_custom_call.1} parent=1 // pred_check_branch
      %135 = sbr.rel (%p133) target = $region45
    $region44: #{tpu_custom_call.1} parent=1 // pred_region
      %136 = vst [vmem:[#allocation11] sm:$0x1] 0.0
      %137 = vst [vmem:[#allocation12] sm:$0x1] 0.0
    $region45: #{tpu_custom_call.1} parent=1 // pred_fallthru
      _
    %v138 = vld [vmem:[#allocation2] sm:$0xff]
    %v139 = vld [vmem:[#allocation2 + $0x8] sm:$0x1]
    %v140 = vld [vmem:[#allocation5] sm:$0xff]
    %v141 = vld [vmem:[#allocation5 + $0x8] sm:$0x1]
    %v142 = vld [vmem:[#allocation7] sm:$0xff]
    %v143 = vld [vmem:[#allocation7 + $0x8] sm:$0x1]
    %v144 = vld [vmem:[#allocation8] sm:$0xff]
    %v145 = vld [vmem:[#allocation8 + $0x8] sm:$0x1]
    %v146 = vld [vmem:[#allocation10] sm:$0xff]
    %v147 = vld [vmem:[#allocation10 + $0x8] sm:$0x1]
    %v148 = vsub.f32 %v144, %v140
    %v149 = vsub.f32 %v145, %v141
    %v150 = vand.u32 2147483647, %v148
    %v151 = vand.u32 2147483647, %v149
    %v152 = vlog2.pop %v142
    %v153 = vmul.f32 %v152, 0.6931472
    %v154 = vlog2.pop %v143
    %v155 = vmul.f32 %v154, 0.6931472
    %v156 = vadd.f32 %v153, 0.9189385
    %v157 = vadd.f32 %v155, 0.9189385
    %v158 = vmul.f32 %v142, 1.4142135
    %v159 = vmul.f32 %v143, 1.4142135
    %v160 = vadd.f32 %v158, 1e-09
    %v161 = vadd.f32 %v159, 1e-09
    %v162 = vrcp.pop %v160
    %v163 = vmul.f32 %v160, %v162
    %v164 = vsub.f32 1.0, %v163
    %v165 = vmul.f32 %v162, %v164
    %v166 = vadd.f32 %v162, %v165
    %vm167 = vweird.f32 %v160
    %vm168 = vweird.f32 %v162
    %vm169 = vmor %vm167, %vm168
    %v170 = vsel %vm169, %v162, %v166
    %v171 = vand.u32 2147483647, %v160
    %vm172 = vcmp.eq.f32.partialorder %v171, 8.507059e+37
    %v173 = vand.u32 %v160, 2147483648
    %v174 = vor.u32 1.1754944e-38, %v173
    %v175 = vsel %vm172, %v174, %v170
    %v176 = vmul.f32 %v150, %v175
    %v177 = vrcp.pop %v161
    %v178 = vmul.f32 %v161, %v177
    %v179 = vsub.f32 1.0, %v178
    %v180 = vmul.f32 %v177, %v179
    %v181 = vadd.f32 %v177, %v180
    %vm182 = vweird.f32 %v161
    %vm183 = vweird.f32 %v177
    %vm184 = vmor %vm182, %vm183
    %v185 = vsel %vm184, %v177, %v181
    %v186 = vand.u32 2147483647, %v161
    %vm187 = vcmp.eq.f32.partialorder %v186, 8.507059e+37
    %v188 = vand.u32 %v161, 2147483648
    %v189 = vor.u32 1.1754944e-38, %v188
    %v190 = vsel %vm187, %v189, %v185
    %v191 = vmul.f32 %v151, %v190
    %v192 = vadd.f32 %v156, %v176
    %v193 = vadd.f32 %v157, %v191
    %v194 = vadd.f32 %v138, %v192
    %v195 = vadd.f32 %v139, %v193
    %v196 = vmul.f32 %v194, %v146
    %v197 = vmul.f32 %v195, %v147
    %v198 = vld [vmem:[#allocation11] sm:$0x1]
    %v200 = vrot.slane %v196, 1
    %v201 = vrot.slane %v196, 2
    %v202 = vrot.slane %v196, 3
    %v203 = vrot.slane %v196, 4
    %v204 = vrot.slane %v196, 5
    %v205 = vrot.slane %v196, 6
    %v206 = vrot.slane %v196, 7
    %vm214 = vcmask 1040384
    %v215 = vsel %vm214, %v196, 0.0
    %v216 = vsel %vm214, %v200, 0.0
    %v217 = vadd.f32 %v215, %v216
    %v218 = vsel %vm214, %v201, 0.0
    %v219 = vadd.f32 %v217, %v218
    %v220 = vsel %vm214, %v202, 0.0
    %v221 = vadd.f32 %v219, %v220
    %v222 = vsel %vm214, %v203, 0.0
    %v223 = vadd.f32 %v221, %v222
    %v224 = vsel %vm214, %v204, 0.0
    %v225 = vadd.f32 %v223, %v224
    %v226 = vsel %vm214, %v205, 0.0
    %v227 = vadd.f32 %v225, %v226
    %v228 = vsel %vm214, %v206, 0.0
    %v229 = vadd.f32 %v227, %v228
    %v230 = vsel %vm214, %v197, 0.0
    %v231 = vadd.f32 %v229, %v230
    %v232 = vadd.f32 %v198, %v231
    %233 = vst [vmem:[#allocation11] sm:$0x1] %v232
    %v234 = vld [vmem:[#allocation12] sm:$0x1]
    %v236 = vrot.slane %v146, 1
    %v237 = vrot.slane %v146, 2
    %v238 = vrot.slane %v146, 3
    %v239 = vrot.slane %v146, 4
    %v240 = vrot.slane %v146, 5
    %v241 = vrot.slane %v146, 6
    %v242 = vrot.slane %v146, 7
    %v250 = vsel %vm214, %v146, 0.0
    %v251 = vsel %vm214, %v236, 0.0
    %v252 = vadd.f32 %v250, %v251
    %v253 = vsel %vm214, %v237, 0.0
    %v254 = vadd.f32 %v252, %v253
    %v255 = vsel %vm214, %v238, 0.0
    %v256 = vadd.f32 %v254, %v255
    %v257 = vsel %vm214, %v239, 0.0
    %v258 = vadd.f32 %v256, %v257
    %v259 = vsel %vm214, %v240, 0.0
    %v260 = vadd.f32 %v258, %v259
    %v261 = vsel %vm214, %v241, 0.0
    %v262 = vadd.f32 %v260, %v261
    %v263 = vsel %vm214, %v242, 0.0
    %v264 = vadd.f32 %v262, %v263
    %v265 = vsel %vm214, %v147, 0.0
    %v266 = vadd.f32 %v264, %v265
    %v267 = vadd.f32 %v234, %v266
    %268 = vst [vmem:[#allocation12] sm:$0x1] %v267
    // Predicated region
    $region46: #{tpu_custom_call.1} parent=1 // pred_check
      _
    $region47: #{tpu_custom_call.1} parent=1 // pred_check_branch
      %270 = sbr.rel (0) target = $region49
    $region48: #{tpu_custom_call.1} parent=1 // pred_region
      %272 = vsyncadd [#allocation4], 0
      %s274 = sshll.u32 [#allocation11], 4
      %s275 = int_to_ptr.vmem [resolvable:$true] %s274
      %s276 = sshll.u32 %s5, 4
      %s277 = int_to_ptr.hbm [resolvable:$true] %s276
      %279 = dma.vmem_to_hbm [thread:$0]  %s275, 16, %s277, [#allocation4]
    $region49: #{tpu_custom_call.1} parent=1 // pred_fallthru
      _
    // Predicated region
    $region50: #{tpu_custom_call.1} parent=1 // pred_check
      _
    $region51: #{tpu_custom_call.1} parent=1 // pred_check_branch
      %281 = sbr.rel (0) target = $region53
    $region52: #{tpu_custom_call.1} parent=1 // pred_region
      %283 = vsyncadd [#allocation13], 0
      %s285 = sshll.u32 [#allocation12], 4
      %s286 = int_to_ptr.vmem [resolvable:$true] %s285
      %s287 = sshll.u32 %s6, 4
      %s288 = int_to_ptr.hbm [resolvable:$true] %s287
      %290 = dma.vmem_to_hbm [thread:$0]  %s286, 16, %s288, [#allocation13]
    $region53: #{tpu_custom_call.1} parent=1 // pred_fallthru
      _
    // Predicated region
    $region54: #{tpu_custom_call.1} parent=1 // pred_check
      _
    $region55: #{tpu_custom_call.1} parent=1 // pred_check_branch
      %292 = sbr.rel (0) target = $region57
    $region56: #{tpu_custom_call.1} parent=1 // pred_region
      %294 = dma.done [#allocation4], 16
    $region57: #{tpu_custom_call.1} parent=1 // pred_fallthru
      _
    // Predicated region
    $region58: #{tpu_custom_call.1} parent=1 // pred_check
      _
    $region59: #{tpu_custom_call.1} parent=1 // pred_check_branch
      %296 = sbr.rel (0) target = $region61
    $region60: #{tpu_custom_call.1} parent=1 // pred_region
      %298 = dma.done [#allocation13], 16
    $region61: #{tpu_custom_call.1} parent=1 // pred_fallthru
      _
    %299 = vsyncpa [#allocation3], 1
    %300 = vsyncpa [#allocation6], 1
    %301 = vsyncpa [#allocation9], 1
    %302 = vsyncpa [#allocation4], 1
    %303 = vsyncpa [#allocation13], 1

</llo_original>
